<compile_context>
chip_gen: v7x
topology: tpu7x:2x2x1
jax: 0.10.0
libtpu: 0.0.40
codegen_flags: <defaults>
</compile_context>

<pallas_src>
import functools

import jax
import jax.numpy as jnp
from jax.experimental import pallas as pl
from jax.experimental.pallas import tpu as pltpu


def _rmsnorm_kernel(x_ref, w_ref, o_ref, *, eps, inv_c):
    # x_ref: (tm, C) tile, w_ref: (1, C), o_ref: (tm, C)
    x = x_ref[...].astype(jnp.float32)
    # sum -> scale by precomputed 1/C (cheap VPU mul), rsqrt goes to the EUP
    # slot which is otherwise idle in this kernel.
    ms = jnp.sum(x * x, axis=-1, keepdims=True) * inv_c      # (tm, 1)
    inv = jax.lax.rsqrt(ms + eps)                             # (tm, 1)
    # Weight broadcast/cast happens once per grid step (no inner loop here;
    # keep it hoisted if one is ever added -- broadcast_in_dim is not CSE'd).
    w = w_ref[...].astype(jnp.float32)                        # (1, C)
    o_ref[...] = (x * inv * w).astype(o_ref.dtype)


def _round_up(n, m):
    return ((n + m - 1) // m) * m


def _pick_row_block(rows, c, itemsize, requested, vmem_budget_bytes):
    """Largest row tile that keeps ~2 in + 2 out buffers under the budget."""
    # 2x double-buffered input tiles + 2x output tiles ~= 4 * tile_bytes.
    max_rb = vmem_budget_bytes // (4 * c * itemsize)
    max_rb = max(8, (max_rb // 8) * 8)
    rb = min(requested, max_rb)
    # No point in a tile larger than the (sublane-rounded) number of rows.
    rb = min(rb, _round_up(rows, 8))
    return max(8, (rb // 8) * 8)


def rmsnorm(x, weight, eps, *, row_block=1024, vmem_limit_bytes=32 << 20):
    """x: (B, T, C) array, weight: (C,), returns (B, T, C)."""
    B, T, C = x.shape
    rows = B * T
    itemsize = jnp.dtype(x.dtype).itemsize

    x2 = x.reshape(rows, C)
    w2 = weight.reshape(1, C)

    # Size the row tile against a conservative VMEM buffer budget (~3/4 of the
    # scoped limit) so double-buffering stays intact on v7x (64 MiB physical)
    # and v5e (16 MiB scoped default, raised below via vmem_limit_bytes).
    buffer_budget = (vmem_limit_bytes * 3) // 4
    rb = _pick_row_block(rows, C, itemsize, row_block, buffer_budget)

    # Pad rows up to a multiple of the row tile; padded rows compute harmless
    # values (rsqrt(eps)) and are sliced off afterwards.
    grid_m = pl.cdiv(rows, rb)
    padded_rows = grid_m * rb
    if padded_rows != rows:
        x2 = jnp.pad(x2, ((0, padded_rows - rows), (0, 0)))

    # Advisory cost: 2x HBM traffic for x (read+write) + weight, ~3 flops/elem,
    # one rsqrt per row.
    cost = pl.CostEstimate(
        flops=3 * rows * C,
        transcendentals=rows,
        bytes_accessed=2 * rows * C * itemsize + C * itemsize,
    )

    kernel = functools.partial(_rmsnorm_kernel, eps=eps, inv_c=1.0 / C)

    out = pl.pallas_call(
        kernel,
        out_shape=jax.ShapeDtypeStruct((padded_rows, C), x.dtype),
        grid_spec=pltpu.PrefetchScalarGridSpec(
            num_scalar_prefetch=0,
            grid=(grid_m,),
            in_specs=[
                pl.BlockSpec((rb, C), lambda i: (i, 0)),
                # Constant block index -> Pallas skips the re-DMA of weight.
                pl.BlockSpec((1, C), lambda i: (0, 0)),
            ],
            out_specs=pl.BlockSpec((rb, C), lambda i: (i, 0)),
        ),
        compiler_params=pltpu.CompilerParams(
            dimension_semantics=("parallel",),
            vmem_limit_bytes=vmem_limit_bytes,
        ),
        cost_estimate=cost,
    )(x2, w2)

    if padded_rows != rows:
        out = out[:rows]
    return out.reshape(B, T, C)


def rmsnorm_ref(x, weight, eps):
    xf = x.astype(jnp.float32)
    ms = jnp.mean(xf * xf, axis=-1, keepdims=True)
    return (weight * (xf * jax.lax.rsqrt(ms + eps))).astype(x.dtype)


if __name__ == "__main__":
    # Small but lane-dense demo: C is a multiple of 128 like real model dims.
    B, T, C = 2, 8, 128
    eps = 1e-6

    key = jax.random.PRNGKey(0)
    x = jax.random.normal(key, (B, T, C), dtype=jnp.float32)
    # Parameter init matches nn.Parameter(torch.ones(size))
    weight = jnp.ones((C,), dtype=jnp.float32)

    out = rmsnorm(x, weight, eps)
    jax.block_until_ready(out)

    ref = rmsnorm_ref(x, weight, eps)
    assert out.shape == (B, T, C)
    assert jnp.allclose(out, ref, atol=1e-5, rtol=1e-5)

    # Also exercise a non-multiple row count (cdiv + padding path).
    B2, T2 = 3, 7
    x2 = jax.random.normal(jax.random.PRNGKey(1), (B2, T2, C), dtype=jnp.float32)
    out2 = rmsnorm(x2, weight, eps)
    jax.block_until_ready(out2)
    assert jnp.allclose(out2, rmsnorm_ref(x2, weight, eps), atol=1e-5, rtol=1e-5)

    print("KERNEL_OK")
</pallas_src>

<mosaic_0001>
module attributes {stable_mosaic.version = 11 : i64} {
  func.func @_rmsnorm_kernel(%arg0: i32, %arg1: memref<16x128xf32, #tpu.memory_space<vmem>>, %arg2: memref<1x128xf32, #tpu.memory_space<vmem>>, %arg3: memref<16x128xf32, #tpu.memory_space<vmem>>) attributes {dimension_semantics = [#tpu.dimension_semantics<parallel>], iteration_bounds = array<i64: 1>, scalar_prefetch = 0 : i64, scratch_operands = 0 : i64, tpu.core_type = #tpu.core_type<tc>, window_params = [{transform_indices = @transform_0, window_bounds = array<i64: 16, 128>}, {pipeline_mode = #tpu.pipeline_mode<synchronous>, transform_indices = @transform_1, window_bounds = array<i64: 1, 128>}, {transform_indices = @transform_2, window_bounds = array<i64: 16, 128>}]} {
    %c0 = arith.constant 0 : index
    %c0_0 = arith.constant 0 : index
    %0 = vector.load %arg1[%c0, %c0_0] : memref<16x128xf32, #tpu.memory_space<vmem>>, vector<16x128xf32>
    %1 = arith.mulf %0, %0 : vector<16x128xf32>
    %cst = arith.constant dense<0.000000e+00> : vector<16xf32>
    %2 = vector.multi_reduction <add>, %1, %cst [1] : vector<16x128xf32> to vector<16xf32>
    %3 = vector.shape_cast %2 : vector<16xf32> to vector<16x1xf32>
    %cst_1 = arith.constant 7.812500e-03 : f32
    %4 = vector.broadcast %cst_1 : f32 to vector<16x1xf32>
    %5 = arith.mulf %3, %4 : vector<16x1xf32>
    %cst_2 = arith.constant 9.99999997E-7 : f32
    %6 = vector.broadcast %cst_2 : f32 to vector<16x1xf32>
    %7 = arith.addf %5, %6 : vector<16x1xf32>
    %8 = math.rsqrt %7 : vector<16x1xf32>
    %c0_3 = arith.constant 0 : index
    %c0_4 = arith.constant 0 : index
    %9 = vector.load %arg2[%c0_3, %c0_4] : memref<1x128xf32, #tpu.memory_space<vmem>>, vector<1x128xf32>
    %10 = vector.broadcast %8 : vector<16x1xf32> to vector<16x128xf32>
    %11 = arith.mulf %0, %10 : vector<16x128xf32>
    %12 = vector.broadcast %9 : vector<1x128xf32> to vector<16x128xf32>
    %13 = arith.mulf %11, %12 : vector<16x128xf32>
    %c0_5 = arith.constant 0 : index
    %c0_6 = arith.constant 0 : index
    %14 = vector.load %arg3[%c0_5, %c0_6] : memref<16x128xf32, #tpu.memory_space<vmem>>, vector<16x128xf32>
    tpu.vector_store %arg3[%c0_5, %c0_6], %13 {strides = array<i32>} : memref<16x128xf32, #tpu.memory_space<vmem>>, vector<16x128xf32>,
    return
  }
  func.func @transform_0(%arg0: i32) -> (i32, i32) {
    %c0_i32 = arith.constant 0 : i32
    %c0_i32_0 = arith.constant 0 : i32
    return %arg0, %c0_i32 : i32, i32
  }
  func.func @transform_1(%arg0: i32) -> (i32, i32) {
    %c0_i32 = arith.constant 0 : i32
    %c0_i32_0 = arith.constant 0 : i32
    %c0_i32_1 = arith.constant 0 : i32
    return %c0_i32, %c0_i32_0 : i32, i32
  }
  func.func @transform_2(%arg0: i32) -> (i32, i32) {
    %c0_i32 = arith.constant 0 : i32
    %c0_i32_0 = arith.constant 0 : i32
    return %arg0, %c0_i32 : i32, i32
  }
}

</mosaic_0001>

<llo_original>
// kernel: tpu_custom_call.1
$region0: #{tpu_custom_call.1}
  #allocation0 [shape = 'u32[]', space=smem, size = 0x4, offset = 0x4, fixed_abs, tag = 'smem constant byte address 0x4 - core index']
  #allocation1 [shape = 'u32[144,128]{1,0:T(1,128)}', space=vmem, size = 0x12000, scoped, tag = 'internal scratch']
  %s0 = inlined_call_operand.hbm [shape: f32[16,128], index: 0, kind: input, shape index: {}]
  %s1 = inlined_call_operand.vmem [shape: f32[1,128], index: 1, kind: input, shape index: {}]
  %s2 = inlined_call_operand.hbm [shape: f32[16,128], index: 2, kind: output, shape index: {}]
  %s3 = sld [smem:[#allocation0]]
  $region22: #{tpu_custom_call.1} parent=0
    _
  %s5 = ssub.s32 1, %s3
  %s6 = scalar_select 0, %s5, %s3
  $region1: #{tpu_custom_call.1} parent=0
    #allocation2 [shape = 'u8[8192]{0}', space=vmem, size = 0x2000, scoped, tag = 'input window, operand 0, single buffered']
    #allocation3 [shape = 's32[1]{0}', space=sflag, size = 0x4, scoped, tag = 'scoped memory for tpu_custom_call.1']
    #allocation4 [shape = 's32[1]{0}', space=sflag, size = 0x4, scoped, tag = 'scoped memory for tpu_custom_call.1']
    #allocation5 [shape = 'u8[8192]{0}', space=vmem, size = 0x2000, scoped, tag = 'output window, operand 0, single buffered']
    %7 = vsyncpa [#allocation3], 0
    %8 = vsyncpa [#allocation4], 0
    // Predicated region
    $region2: #{tpu_custom_call.1} parent=1 // pred_check
      _
    $region3: #{tpu_custom_call.1} parent=1 // pred_check_branch
      %10 = sbr.rel (0) target = $region5
    $region4: #{tpu_custom_call.1} parent=1 // pred_region
      %s12 = ssub.s32 256, 256
      %13 = vsyncadd [#allocation3], %s12
      %s14 = sshll.u32 [#allocation2], 4
      %s15 = int_to_ptr.vmem [resolvable:$true] %s14
      %20 = dma.hbm_to_vmem [thread:$0]  %s0, 256, %s15, [#allocation3], 128, 128, 8
    $region5: #{tpu_custom_call.1} parent=1 // pred_fallthru
      _
    // Predicated region
    $region6: #{tpu_custom_call.1} parent=1 // pred_check
      _
    $region7: #{tpu_custom_call.1} parent=1 // pred_check_branch
      %22 = sbr.rel (0) target = $region9
    $region8: #{tpu_custom_call.1} parent=1 // pred_region
      _
    $region9: #{tpu_custom_call.1} parent=1 // pred_fallthru
      _
    // Predicated region
    $region10: #{tpu_custom_call.1} parent=1 // pred_check
      _
    $region11: #{tpu_custom_call.1} parent=1 // pred_check_branch
      %24 = sbr.rel (0) target = $region13
    $region12: #{tpu_custom_call.1} parent=1 // pred_region
      %25 = dma.done [#allocation3], 256
    $region13: #{tpu_custom_call.1} parent=1 // pred_fallthru
      _
    %v26 = vld [vmem:[#allocation2] sm:$0xff]
    %v27 = vld [vmem:[#allocation2 + $0x8] sm:$0xff]
    %v28 = vmul.f32 %v26, %v26
    %v29 = vmul.f32 %v27, %v27
    %30 = vadd.xlane.f32.xlu0 %v28
    %v31 = vpop.xlane.xlu0 %30
    %32 = vadd.xlane.f32.xlu0 %v29
    %v33 = vpop.xlane.xlu0 %32
    %v34 = vmul.f32 %v31, 0.0078125
    %v35 = vmul.f32 %v33, 0.0078125
    %v36 = vadd.f32 %v34, 1e-06
    %v37 = vadd.f32 %v35, 1e-06
    %v38 = vrsqrt.pop %v36
    %v39 = vrsqrt.pop %v37
    %v40 = vld [vmem:[%s1] sm:$0x1]
    %v41 = vmul.f32 %v26, %v38
    %v42 = vmul.f32 %v27, %v39
    %v44 = vlaneseq
    %v45 = vshrl.u32 %v44, 7
    %v46 = vsub.s32 0, %v45
    %v47 = vrot.slane %v40, %v46
    %v49 = vmul.f32 %v41, %v47
    %v50 = vmul.f32 %v42, %v47
    %51 = vst [vmem:[#allocation5] sm:$0xff] %v49
    %52 = vst [vmem:[#allocation5 + $0x8] sm:$0xff] %v50
    // Predicated region
    $region14: #{tpu_custom_call.1} parent=1 // pred_check
      _
    $region15: #{tpu_custom_call.1} parent=1 // pred_check_branch
      %54 = sbr.rel (0) target = $region17
    $region16: #{tpu_custom_call.1} parent=1 // pred_region
      %s56 = ssub.s32 256, 256
      %57 = vsyncadd [#allocation4], %s56
      %s58 = sshll.u32 [#allocation5], 4
      %s59 = int_to_ptr.vmem [resolvable:$true] %s58
      %64 = dma.vmem_to_hbm [thread:$0]  %s59, 256, %s2, [#allocation4], 128, 128, 8
    $region17: #{tpu_custom_call.1} parent=1 // pred_fallthru
      _
    // Predicated region
    $region18: #{tpu_custom_call.1} parent=1 // pred_check
      _
    $region19: #{tpu_custom_call.1} parent=1 // pred_check_branch
      %66 = sbr.rel (0) target = $region21
    $region20: #{tpu_custom_call.1} parent=1 // pred_region
      %67 = dma.done [#allocation4], 256
    $region21: #{tpu_custom_call.1} parent=1 // pred_fallthru
      _
    %68 = vsyncpa [#allocation3], 1
    %69 = vsyncpa [#allocation4], 1

</llo_original>
